<compile_context>
chip_gen: v7x
topology: tpu7x:2x2x1
jax: 0.10.0
libtpu: 0.0.40
codegen_flags: <defaults>
</compile_context>

<pallas_src>
import jax
import jax.numpy as jnp
from jax.experimental import pallas as pl
from jax.experimental.pallas import tpu as pltpu


# ---------------------------------------------------------------------------
# Kernels
# ---------------------------------------------------------------------------

def _attention_kernel(q_ref, k_ref, v_ref, o_ref):
    """Single-pass kernel: the whole key axis fits in one VMEM block."""
    q = q_ref[...]                     # (Bn, Q, E) native dtype -> MXU
    k = k_ref[...]                     # (Bn, K, E)
    v = v_ref[...]                     # (Bn, K, E)

    # energy[b, q, k] = sum_e q[b, q, e] * k[b, k, e]
    # Batched contraction on E — no k transpose materialized; f32 accumulate.
    energy = jax.lax.dot_general(
        q, k,
        dimension_numbers=(((2,), (2,)), ((0,), (0,))),
        preferred_element_type=jnp.float32,
    )                                                    # (Bn, Q, K) f32

    # Numerically-stable softmax over K, normalization deferred to the output.
    m = jnp.max(energy, axis=-1, keepdims=True)          # (Bn, Q, 1)
    p = jnp.exp(energy - m)                              # (Bn, Q, K) f32
    denom = jnp.sum(p, axis=-1, keepdims=True)           # (Bn, Q, 1)

    # output[b, q, e] = sum_k p[b, q, k] * v[b, k, e]   (f32 accumulation)
    out = jax.lax.dot_general(
        p.astype(v.dtype), v,
        dimension_numbers=(((2,), (1,)), ((0,), (0,))),
        preferred_element_type=jnp.float32,
    )                                                    # (Bn, Q, E) f32

    # Normalize the (Q, E) output once; approx reciprocal runs on the EUP slot.
    out = out * pl.reciprocal(denom, approx=True)
    o_ref[...] = out.astype(o_ref.dtype)


def _attention_flash_kernel(q_ref, k_ref, v_ref, o_ref, m_sc, l_sc, acc_sc):
    """K-tiled online-softmax kernel. Grid = (batch_blocks, k_blocks)."""
    kb = pl.program_id(1)

    @pl.when(kb == 0)
    def _():
        m_sc[...] = jnp.full_like(m_sc, -jnp.inf)
        l_sc[...] = jnp.zeros_like(l_sc)
        acc_sc[...] = jnp.zeros_like(acc_sc)

    q = q_ref[...]                     # (Bn, Q, E)
    k = k_ref[...]                     # (Bn, Kt, E)
    v = v_ref[...]                     # (Bn, Kt, E)

    s = jax.lax.dot_general(
        q, k,
        dimension_numbers=(((2,), (2,)), ((0,), (0,))),
        preferred_element_type=jnp.float32,
    )                                                    # (Bn, Q, Kt) f32

    m_prev = m_sc[...]
    m_new = jnp.maximum(m_prev, jnp.max(s, axis=-1, keepdims=True))
    alpha = jnp.exp(m_prev - m_new)                      # (Bn, Q, 1)
    p = jnp.exp(s - m_new)                               # (Bn, Q, Kt)

    l_sc[...] = alpha * l_sc[...] + jnp.sum(p, axis=-1, keepdims=True)
    pv = jax.lax.dot_general(
        p.astype(v.dtype), v,
        dimension_numbers=(((2,), (1,)), ((0,), (0,))),
        preferred_element_type=jnp.float32,
    )                                                    # (Bn, Q, E) f32
    acc_sc[...] = alpha * acc_sc[...] + pv
    m_sc[...] = m_new

    @pl.when(kb == pl.num_programs(1) - 1)
    def _():
        o_ref[...] = (acc_sc[...] *
                      pl.reciprocal(l_sc[...], approx=True)).astype(o_ref.dtype)


# ---------------------------------------------------------------------------
# Block sizing (per-generation VMEM budget, divisor-only tiling — no padding)
# ---------------------------------------------------------------------------

_MAX_SINGLE_PASS_K = 2048   # beyond this, tile K with the online-softmax kernel
_TARGET_BLOCK_K = 1024      # target K tile when tiling


def _vmem_budget():
    """Return (vmem_limit_bytes, block-picker budget) from the chip's VMEM."""
    phys = 64 * 1024 * 1024            # conservative fallback = v7x per-TC VMEM
    try:
        info = pltpu.get_tpu_info()
        phys = int(getattr(info, "vmem_capacity_bytes", phys)) or phys
    except Exception:
        pass
    # Scoped limit ~= 5/8 of physical -> ~40 MiB (v7x), ~80 MiB (v5e/v6e).
    vmem_limit = min((phys * 5) // 8, 100 * 1024 * 1024)
    # Block picker uses 3/4 of the scoped limit (headroom for compiler scratch).
    return int(vmem_limit), int((vmem_limit * 3) // 4)


def _per_batch_vmem_bytes(Q, E, block_k, itemsize, flash):
    b = 2 * Q * E * itemsize               # q block (double-buffered)
    b += 2 * 2 * block_k * E * itemsize    # k + v blocks (double-buffered)
    b += 2 * Q * E * itemsize              # o block (double-buffered)
    b += 2 * Q * block_k * 4               # energy + exp(energy) (f32)
    b += Q * E * 4                         # f32 PV product
    if flash:
        b += Q * E * 4 + 2 * Q * 4         # acc + running max/sum scratch (f32)
    return b


def _largest_divisor_leq(n, cap):
    cap = max(1, min(n, int(cap)))
    for d in range(cap, 0, -1):
        if n % d == 0:
            return d
    return 1


def _pick_block_k(K):
    if K <= _MAX_SINGLE_PASS_K:
        return K
    # Largest divisor of K that is a multiple of 8 ((8,128) tiling rule) and
    # <= _TARGET_BLOCK_K; if none exists keep K whole.
    start = _TARGET_BLOCK_K - (_TARGET_BLOCK_K % 8)
    for d in range(start, 7, -8):
        if K % d == 0:
            return d
    return K


def _pick_block_n(N, Q, E, block_k, itemsize, budget, flash):
    per_b = _per_batch_vmem_bytes(Q, E, block_k, itemsize, flash)
    cap = max(1, budget // max(per_b, 1))
    if N >= 2:
        # Keep >= 2 batch grid steps so both v7x TensorCores get work under
        # dimension_semantics=("parallel", ...); costs <= ~0.35 us on 1-TC chips.
        cap = min(cap, max(1, N // 2))
    return _largest_divisor_leq(N, cap)


# ---------------------------------------------------------------------------
# Wrapper
# ---------------------------------------------------------------------------

def attention(query, keys, values, *, block_n=None, block_k=None):
    """query: (N, Q, E), keys/values: (N, K, E) -> (N, Q, E) (softmax over K)."""
    N, Q, E = query.shape
    _, K, _ = keys.shape
    assert keys.shape == (N, K, E) and values.shape == (N, K, E)

    vmem_limit, budget = _vmem_budget()
    itemsize = jnp.dtype(query.dtype).itemsize

    if block_k is None:
        block_k = _pick_block_k(K)
    assert K % block_k == 0 and (block_k == K or block_k % 8 == 0), (
        "block_k must divide K and be a multiple of 8 (or equal K)")
    k_blocks = K // block_k
    flash = k_blocks > 1

    if block_n is None:
        block_n = _pick_block_n(N, Q, E, block_k, itemsize, budget, flash)
    assert N % block_n == 0, "block_n must divide the batch size N"
    n_blocks = N // block_n
    # TODO(synk): for batch sizes with no good divisor (e.g. a large prime N),
    # handle a ragged last block with a masked store instead of block_n=1.

    if not flash:
        kernel = _attention_kernel
        grid = (n_blocks,)
        in_specs = [
            pl.BlockSpec((block_n, Q, E), lambda n: (n, 0, 0)),
            pl.BlockSpec((block_n, K, E), lambda n: (n, 0, 0)),
            pl.BlockSpec((block_n, K, E), lambda n: (n, 0, 0)),
        ]
        out_specs = pl.BlockSpec((block_n, Q, E), lambda n: (n, 0, 0))
        scratch_shapes = []
        dim_sem = ("parallel",)
    else:
        kernel = _attention_flash_kernel
        grid = (n_blocks, k_blocks)          # reduction (K) axis last
        in_specs = [
            pl.BlockSpec((block_n, Q, E), lambda n, kb: (n, 0, 0)),
            pl.BlockSpec((block_n, block_k, E), lambda n, kb: (n, kb, 0)),
            pl.BlockSpec((block_n, block_k, E), lambda n, kb: (n, kb, 0)),
        ]
        out_specs = pl.BlockSpec((block_n, Q, E), lambda n, kb: (n, 0, 0))
        scratch_shapes = [
            pltpu.VMEM((block_n, Q, 1), jnp.float32),   # running max
            pltpu.VMEM((block_n, Q, 1), jnp.float32),   # running sum
            pltpu.VMEM((block_n, Q, E), jnp.float32),   # output accumulator
        ]
        dim_sem = ("parallel", "arbitrary")

    # TODO(synk): on v7x, consider pltpu.CORE_PARALLEL on the batch-block axis;
    # and if xprof shows exposed DMA (and VMEM allows), try
    # pipeline_mode=pl.Buffered(3) on the keys/values BlockSpecs.
    return pl.pallas_call(
        kernel,
        out_shape=jax.ShapeDtypeStruct((N, Q, E), query.dtype),
        grid_spec=pltpu.PrefetchScalarGridSpec(
            num_scalar_prefetch=0,
            grid=grid,
            in_specs=in_specs,
            out_specs=out_specs,
            scratch_shapes=scratch_shapes,
        ),
        compiler_params=pltpu.CompilerParams(
            dimension_semantics=dim_sem,
            vmem_limit_bytes=vmem_limit,
        ),
    )(query, keys, values)


def attention_ref(query, keys, values):
    """Pure-JAX reference mirroring the PyTorch forward."""
    energy = jnp.einsum("nqe,nke->nqk", query, keys)
    attn = jax.nn.softmax(energy, axis=-1)
    return jnp.einsum("nqk,nke->nqe", attn, values)


if __name__ == "__main__":
    key = jax.random.PRNGKey(0)
    kq, kk, kv = jax.random.split(key, 3)

    # Shapes consistent with the module's forward:
    # N=4 batches, query_len=8, key_len(num_reviews)=8, embed_dim=128
    # (embed dim a multiple of 128 keeps the lane axis / output stores dense).
    N, Q, K, E = 4, 8, 8, 128
    query = jax.random.normal(kq, (N, Q, E), dtype=jnp.float32)
    keys = jax.random.normal(kk, (N, K, E), dtype=jnp.float32)
    values = jax.random.normal(kv, (N, K, E), dtype=jnp.float32)

    out = jax.block_until_ready(attention(query, keys, values))
    ref = attention_ref(query, keys, values)
    assert out.shape == (N, Q, E)
    # Tolerance accounts for the EUP approximate reciprocal in the epilogue.
    assert jnp.allclose(out, ref, atol=2e-2, rtol=2e-2), (
        f"single-pass max abs diff = {jnp.max(jnp.abs(out - ref))}")

    # Also exercise the K-tiled online-softmax (flash) path with a forced tile.
    N2, Q2, K2 = 2, 8, 32
    q2 = jax.random.normal(kq, (N2, Q2, E), dtype=jnp.float32)
    k2 = jax.random.normal(kk, (N2, K2, E), dtype=jnp.float32)
    v2 = jax.random.normal(kv, (N2, K2, E), dtype=jnp.float32)
    out2 = jax.block_until_ready(attention(q2, k2, v2, block_k=16))
    ref2 = attention_ref(q2, k2, v2)
    assert jnp.allclose(out2, ref2, atol=2e-2, rtol=2e-2), (
        f"flash max abs diff = {jnp.max(jnp.abs(out2 - ref2))}")

    print("KERNEL_OK")
</pallas_src>

<mosaic_0001>
module attributes {stable_mosaic.version = 11 : i64} {
  func.func @_attention_kernel(%arg0: i32, %arg1: memref<2x8x128xf32, #tpu.memory_space<vmem>>, %arg2: memref<2x8x128xf32, #tpu.memory_space<vmem>>, %arg3: memref<2x8x128xf32, #tpu.memory_space<vmem>>, %arg4: memref<2x8x128xf32, #tpu.memory_space<vmem>>) attributes {dimension_semantics = [#tpu.dimension_semantics<parallel>], iteration_bounds = array<i64: 2>, scalar_prefetch = 0 : i64, scratch_operands = 0 : i64, tpu.core_type = #tpu.core_type<tc>, window_params = [{transform_indices = @transform_0, window_bounds = array<i64: 2, 8, 128>}, {transform_indices = @transform_1, window_bounds = array<i64: 2, 8, 128>}, {transform_indices = @transform_2, window_bounds = array<i64: 2, 8, 128>}, {transform_indices = @transform_3, window_bounds = array<i64: 2, 8, 128>}]} {
    %c0 = arith.constant 0 : index
    %c0_0 = arith.constant 0 : index
    %c0_1 = arith.constant 0 : index
    %0 = vector.load %arg1[%c0, %c0_0, %c0_1] : memref<2x8x128xf32, #tpu.memory_space<vmem>>, vector<2x8x128xf32>
    %c0_2 = arith.constant 0 : index
    %c0_3 = arith.constant 0 : index
    %c0_4 = arith.constant 0 : index
    %1 = vector.load %arg2[%c0_2, %c0_3, %c0_4] : memref<2x8x128xf32, #tpu.memory_space<vmem>>, vector<2x8x128xf32>
    %c0_5 = arith.constant 0 : index
    %c0_6 = arith.constant 0 : index
    %c0_7 = arith.constant 0 : index
    %2 = vector.load %arg3[%c0_5, %c0_6, %c0_7] : memref<2x8x128xf32, #tpu.memory_space<vmem>>, vector<2x8x128xf32>
    %cst = arith.constant dense<0.000000e+00> : vector<2x8x8xf32>
    %3 = tpu.matmul %0, %1, %cst {dimension_numbers = #tpu.dot_dimension_numbers<[2], [2], [1], [1], [0, 0, 0, 1, 1, 1], [0], [0]>} : vector<2x8x128xf32>, vector<2x8x128xf32>, vector<2x8x8xf32> -> vector<2x8x8xf32>
    %cst_8 = arith.constant dense<0xFF800000> : vector<2x8xf32>
    %4 = vector.multi_reduction <maximumf>, %3, %cst_8 [2] : vector<2x8x8xf32> to vector<2x8xf32>
    %5 = vector.shape_cast %4 : vector<2x8xf32> to vector<2x8x1xf32>
    %6 = vector.broadcast %5 : vector<2x8x1xf32> to vector<2x8x8xf32>
    %7 = arith.subf %3, %6 : vector<2x8x8xf32>
    %8 = math.exp %7 : vector<2x8x8xf32>
    %cst_9 = arith.constant dense<0.000000e+00> : vector<2x8xf32>
    %9 = vector.multi_reduction <add>, %8, %cst_9 [2] : vector<2x8x8xf32> to vector<2x8xf32>
    %10 = vector.shape_cast %9 : vector<2x8xf32> to vector<2x8x1xf32>
    %cst_10 = arith.constant dense<0.000000e+00> : vector<2x8x128xf32>
    %11 = tpu.matmul %8, %2, %cst_10 {dimension_numbers = #tpu.dot_dimension_numbers<[2], [1], [1], [2], [0, 0, 0, 1, 1, 2], [0], [0]>} : vector<2x8x8xf32>, vector<2x8x128xf32>, vector<2x8x128xf32> -> vector<2x8x128xf32>
    %12 = tpu.reciprocal %10 {approx = true} : vector<2x8x1xf32> -> vector<2x8x1xf32>
    %13 = vector.broadcast %12 : vector<2x8x1xf32> to vector<2x8x128xf32>
    %14 = arith.mulf %11, %13 : vector<2x8x128xf32>
    %c0_11 = arith.constant 0 : index
    %c0_12 = arith.constant 0 : index
    %c0_13 = arith.constant 0 : index
    %15 = vector.load %arg4[%c0_11, %c0_12, %c0_13] : memref<2x8x128xf32, #tpu.memory_space<vmem>>, vector<2x8x128xf32>
    tpu.vector_store %arg4[%c0_11, %c0_12, %c0_13], %14 {strides = array<i32>} : memref<2x8x128xf32, #tpu.memory_space<vmem>>, vector<2x8x128xf32>,
    return
  }
  func.func @transform_0(%arg0: i32) -> (i32, i32, i32) {
    %c0_i32 = arith.constant 0 : i32
    %c0_i32_0 = arith.constant 0 : i32
    %c0_i32_1 = arith.constant 0 : i32
    return %arg0, %c0_i32, %c0_i32_0 : i32, i32, i32
  }
  func.func @transform_1(%arg0: i32) -> (i32, i32, i32) {
    %c0_i32 = arith.constant 0 : i32
    %c0_i32_0 = arith.constant 0 : i32
    %c0_i32_1 = arith.constant 0 : i32
    return %arg0, %c0_i32, %c0_i32_0 : i32, i32, i32
  }
  func.func @transform_2(%arg0: i32) -> (i32, i32, i32) {
    %c0_i32 = arith.constant 0 : i32
    %c0_i32_0 = arith.constant 0 : i32
    %c0_i32_1 = arith.constant 0 : i32
    return %arg0, %c0_i32, %c0_i32_0 : i32, i32, i32
  }
  func.func @transform_3(%arg0: i32) -> (i32, i32, i32) {
    %c0_i32 = arith.constant 0 : i32
    %c0_i32_0 = arith.constant 0 : i32
    %c0_i32_1 = arith.constant 0 : i32
    return %arg0, %c0_i32, %c0_i32_0 : i32, i32, i32
  }
}

</mosaic_0001>

<llo_original>
// kernel: tpu_custom_call.1
$region0: #{tpu_custom_call.1}
  #allocation0 [shape = 'u32[]', space=smem, size = 0x4, offset = 0x4, fixed_abs, tag = 'smem constant byte address 0x4 - core index']
  #allocation1 [shape = 'u32[144,128]{1,0:T(1,128)}', space=vmem, size = 0x12000, scoped, tag = 'internal scratch']
  %s0 = inlined_call_operand.hbm [shape: f32[4,8,128], index: 0, kind: input, shape index: {}]
  %s1 = inlined_call_operand.hbm [shape: f32[4,8,128], index: 1, kind: input, shape index: {}]
  %s2 = inlined_call_operand.hbm [shape: f32[4,8,128], index: 2, kind: input, shape index: {}]
  %s3 = inlined_call_operand.hbm [shape: f32[4,8,128], index: 3, kind: output, shape index: {}]
  %s4 = sld [smem:[#allocation0]]
  $region57: #{tpu_custom_call.1} parent=0
    _
  %s6 = ssub.s32 1, %s4
  %s7 = scalar_select 0, %s6, %s4
  $region1: #{tpu_custom_call.1} parent=0
    #allocation2 [shape = 'u8[16384]{0}', space=vmem, size = 0x4000, scoped, tag = 'input window, operand 0']
    #allocation3 [shape = 's32[2]{0}', space=sflag, size = 0x8, scoped, tag = 'scoped memory for tpu_custom_call.1']
    #allocation4 [shape = 's32[2]{0}', space=sflag, size = 0x8, scoped, tag = 'scoped memory for tpu_custom_call.1']
    #allocation5 [shape = 'u8[16384]{0}', space=vmem, size = 0x4000, scoped, tag = 'input window, operand 1']
    #allocation6 [shape = 's32[2]{0}', space=sflag, size = 0x8, scoped, tag = 'scoped memory for tpu_custom_call.1']
    #allocation7 [shape = 'u8[16384]{0}', space=vmem, size = 0x4000, scoped, tag = 'input window, operand 2']
    #allocation8 [shape = 'u8[16384]{0}', space=vmem, size = 0x4000, scoped, tag = 'output window, operand 0']
    %8 = vsyncpa [#allocation3], 0
    %s9 = scalar_lea.sflag [#allocation3], 1
    %10 = vsyncpa %s9, 0
    %11 = vsyncpa [#allocation6], 0
    %s12 = scalar_lea.sflag [#allocation6], 1
    %13 = vsyncpa %s12, 0
    %14 = vsyncpa [#allocation4], 0
    %s15 = scalar_lea.sflag [#allocation4], 1
    %16 = vsyncpa %s15, 0
    loop: start=0, step=1, limit=4
    $region2: #{tpu_custom_call.1} parent=1 // loop_pre_header
      _
    $region3: #{tpu_custom_call.1} parent=1 // loop_header
      %s18 = sphi 0, %s22
      %p19 = scmp.ge.s32.totalorder %s18, 4
      %s28 = sphi 0, %s30
      %s31 = sphi 0, %s28
      %s32 = sphi 0, %s31
      %s48 = sphi 0, %s32
      %s54 = sphi 0, %s56
      %s57 = sphi 0, %s54
      %s58 = sphi 0, %s57
      %s74 = sphi 0, %s58
      %s80 = sphi 0, %s82
      %s83 = sphi 0, %s80
      %s84 = sphi 0, %s83
      %s100 = sphi 0, %s84
      %s106 = sphi 0, %s108
      %s109 = sphi 0, %s106
      %s110 = sphi 0, %s109
      %s126 = sphi 0, %s110
    $region4: #{tpu_custom_call.1} parent=1 // loop_header_branch
      %21 = sbr.rel (%p19) target = $region8
    $region5: #{tpu_custom_call.1} parent=1 // loop_body
      %s23 = ssub.s32 %s18, 1
      %s24 = ssub.s32 %s18, 2
      %s25 = sadd.s32 %s18, 1
      %s26 = ssub.s32 %s18, %s25
      %p27 = scmp.eq.s32.totalorder %s26, 0
      %s29 = sadd.s32 %s28, 1
      %s30 = scalar_select %p27, %s28, %s29
      %p33 = pneg %p27
      %p34 = scmp.eq.s32.totalorder %s18, 1
      %p35 = por %p33, %p34
      %p36 = scmp.ne.s32.totalorder %s28, %s31
      %p37 = scmp.eq.s32.totalorder %s18, 0
      %p38 = por %p36, %p37
      %p39 = scmp.ne.s32.totalorder %s28, %s31
      %p40 = scmp.eq.s32.totalorder %s23, 1
      %p41 = por %p39, %p40
      %p42 = scmp.ne.s32.totalorder %s31, %s32
      %p43 = scmp.eq.s32.totalorder %s23, 0
      %p44 = por %p42, %p43
      %p45 = scmp.ne.s32.totalorder %s31, %s32
      %p46 = scmp.eq.s32.totalorder %s24, 1
      %p47 = por %p45, %p46
      %p49 = scmp.ne.s32.totalorder %s32, %s48
      %p50 = scmp.eq.s32.totalorder %s24, 0
      %p51 = por %p49, %p50
      %s52 = ssub.s32 %s18, %s25
      %p53 = scmp.eq.s32.totalorder %s52, 0
      %s55 = sadd.s32 %s54, 1
      %s56 = scalar_select %p53, %s54, %s55
      %p59 = pneg %p53
      %p60 = scmp.eq.s32.totalorder %s18, 1
      %p61 = por %p59, %p60
      %p62 = scmp.ne.s32.totalorder %s54, %s57
      %p63 = scmp.eq.s32.totalorder %s18, 0
      %p64 = por %p62, %p63
      %p65 = scmp.ne.s32.totalorder %s54, %s57
      %p66 = scmp.eq.s32.totalorder %s23, 1
      %p67 = por %p65, %p66
      %p68 = scmp.ne.s32.totalorder %s57, %s58
      %p69 = scmp.eq.s32.totalorder %s23, 0
      %p70 = por %p68, %p69
      %p71 = scmp.ne.s32.totalorder %s57, %s58
      %p72 = scmp.eq.s32.totalorder %s24, 1
      %p73 = por %p71, %p72
      %p75 = scmp.ne.s32.totalorder %s58, %s74
      %p76 = scmp.eq.s32.totalorder %s24, 0
      %p77 = por %p75, %p76
      %s78 = ssub.s32 %s18, %s25
      %p79 = scmp.eq.s32.totalorder %s78, 0
      %s81 = sadd.s32 %s80, 1
      %s82 = scalar_select %p79, %s80, %s81
      %p85 = pneg %p79
      %p86 = scmp.eq.s32.totalorder %s18, 1
      %p87 = por %p85, %p86
      %p88 = scmp.ne.s32.totalorder %s80, %s83
      %p89 = scmp.eq.s32.totalorder %s18, 0
      %p90 = por %p88, %p89
      %p91 = scmp.ne.s32.totalorder %s80, %s83
      %p92 = scmp.eq.s32.totalorder %s23, 1
      %p93 = por %p91, %p92
      %p94 = scmp.ne.s32.totalorder %s83, %s84
      %p95 = scmp.eq.s32.totalorder %s23, 0
      %p96 = por %p94, %p95
      %p97 = scmp.ne.s32.totalorder %s83, %s84
      %p98 = scmp.eq.s32.totalorder %s24, 1
      %p99 = por %p97, %p98
      %p101 = scmp.ne.s32.totalorder %s84, %s100
      %p102 = scmp.eq.s32.totalorder %s24, 0
      %p103 = por %p101, %p102
      %s104 = ssub.s32 %s18, %s25
      %p105 = scmp.eq.s32.totalorder %s104, 0
      %s107 = sadd.s32 %s106, 1
      %s108 = scalar_select %p105, %s106, %s107
      %p111 = pneg %p105
      %p112 = scmp.eq.s32.totalorder %s18, 1
      %p113 = por %p111, %p112
      %p114 = scmp.ne.s32.totalorder %s106, %s109
      %p115 = scmp.eq.s32.totalorder %s18, 0
      %p116 = por %p114, %p115
      %p117 = scmp.ne.s32.totalorder %s106, %s109
      %p118 = scmp.eq.s32.totalorder %s23, 1
      %p119 = por %p117, %p118
      %p120 = scmp.ne.s32.totalorder %s109, %s110
      %p121 = scmp.eq.s32.totalorder %s23, 0
      %p122 = por %p120, %p121
      %p123 = scmp.ne.s32.totalorder %s109, %s110
      %p124 = scmp.eq.s32.totalorder %s24, 1
      %p125 = por %p123, %p124
      %p127 = scmp.ne.s32.totalorder %s110, %s126
      %p128 = scmp.eq.s32.totalorder %s24, 0
      %p129 = por %p127, %p128
      %p130 = scmp.le.s32.totalorder 1, %s18
      %p131 = scmp.lt.s32.totalorder %s18, 3
      %p132 = pnand %p130, %p131
      %p133 = pneg %p132
      // Predicated region
      $region9: #{tpu_custom_call.1} parent=5 // pred_check
        _
      $region10: #{tpu_custom_call.1} parent=5 // pred_check_branch
        %135 = sbr.rel (%p132) target = $region12
      $region11: #{tpu_custom_call.1} parent=5 // pred_region
        %s136 = ssub.s32 %s18, 1
      $region12: #{tpu_custom_call.1} parent=5 // pred_fallthru
        _
      %p137 = scmp.lt.s32.totalorder %s18, 2
      // Predicated region
      $region13: #{tpu_custom_call.1} parent=5 // pred_check
        %p138 = pneg %p137
      $region14: #{tpu_custom_call.1} parent=5 // pred_check_branch
        %140 = sbr.rel (%p138) target = $region16
      $region15: #{tpu_custom_call.1} parent=5 // pred_region
        // Predicated region
        $region17: #{tpu_custom_call.1} parent=15 // pred_check
          %p141 = pneg %p38
        $region18: #{tpu_custom_call.1} parent=15 // pred_check_branch
          %143 = sbr.rel (%p141) target = $region20
        $region19: #{tpu_custom_call.1} parent=15 // pred_region
          %s144 = sand.u32 %s28, 1
          %s145 = scalar_lea.sflag [#allocation3], %s144
          %s146 = sand.u32 %s28, 1
          %s147 = smul.addr %s146, 16
          %s148 = scalar_lea.vmem [#allocation2], %s147
          %s149 = smul.u32 2, %s18
          %s151 = ssub.s32 256, 256
          %152 = vsyncadd %s145, %s151
          %s153 = smul.addr %s149, 128
          %s154 = scalar_lea.hbm %s0, %s153
          %s155 = sshll.u32 %s148, 4
          %s156 = int_to_ptr.vmem [resolvable:$true] %s155
          %161 = dma.hbm_to_vmem [thread:$0]  %s154, 256, %s156, %s145, 128, 128, 8
        $region20: #{tpu_custom_call.1} parent=15 // pred_fallthru
          _
        // Predicated region
        $region21: #{tpu_custom_call.1} parent=15 // pred_check
          %p162 = pneg %p64
        $region22: #{tpu_custom_call.1} parent=15 // pred_check_branch
          %164 = sbr.rel (%p162) target = $region24
        $region23: #{tpu_custom_call.1} parent=15 // pred_region
          %s165 = sand.u32 %s18, 1
          %s166 = scalar_lea.sflag [#allocation6], %s165
          %s167 = sand.u32 %s54, 1
          %s168 = smul.addr %s167, 16
          %s169 = scalar_lea.vmem [#allocation5], %s168
          %s170 = smul.u32 2, %s18
          %s172 = ssub.s32 256, 256
          %173 = vsyncadd %s166, %s172
          %s174 = smul.addr %s170, 128
          %s175 = scalar_lea.hbm %s1, %s174
          %s176 = sshll.u32 %s169, 4
          %s177 = int_to_ptr.vmem [resolvable:$true] %s176
          %182 = dma.hbm_to_vmem [thread:$0]  %s175, 256, %s177, %s166, 128, 128, 8
        $region24: #{tpu_custom_call.1} parent=15 // pred_fallthru
          _
        // Predicated region
        $region25: #{tpu_custom_call.1} parent=15 // pred_check
          %p183 = pneg %p90
        $region26: #{tpu_custom_call.1} parent=15 // pred_check_branch
          %185 = sbr.rel (%p183) target = $region28
        $region27: #{tpu_custom_call.1} parent=15 // pred_region
          %s186 = sand.u32 %s18, 1
          %s187 = scalar_lea.sflag [#allocation6], %s186
          %s188 = sand.u32 %s80, 1
          %s189 = smul.addr %s188, 16
          %s190 = scalar_lea.vmem [#allocation7], %s189
          %s191 = smul.u32 2, %s18
          %s193 = ssub.s32 256, 256
          %194 = vsyncadd %s187, %s193
          %s195 = smul.addr %s191, 128
          %s196 = scalar_lea.hbm %s2, %s195
          %s197 = sshll.u32 %s190, 4
          %s198 = int_to_ptr.vmem [resolvable:$true] %s197
          %203 = dma.hbm_to_vmem [thread:$0]  %s196, 256, %s198, %s187, 128, 128, 8
        $region28: #{tpu_custom_call.1} parent=15 // pred_fallthru
          _
      $region16: #{tpu_custom_call.1} parent=5 // pred_fallthru
        _
      %p204 = scmp.le.s32.totalorder 1, %s18
      %p205 = scmp.lt.s32.totalorder %s18, 3
      %p206 = pnand %p204, %p205
      %p207 = pneg %p206
      // Predicated region
      $region29: #{tpu_custom_call.1} parent=5 // pred_check
        _
      $region30: #{tpu_custom_call.1} parent=5 // pred_check_branch
        %209 = sbr.rel (%p206) target = $region32
      $region31: #{tpu_custom_call.1} parent=5 // pred_region
        %s210 = ssub.s32 %s18, 1
        %s211 = sand.u32 %s31, 1
        %s212 = scalar_lea.sflag [#allocation3], %s211
        %s213 = sand.u32 %s31, 1
        %s214 = smul.addr %s213, 16
        %s215 = scalar_lea.vmem [#allocation2], %s214
        // Predicated region
        $region33: #{tpu_custom_call.1} parent=31 // pred_check
          %p216 = pneg %p44
        $region34: #{tpu_custom_call.1} parent=31 // pred_check_branch
          %218 = sbr.rel (%p216) target = $region36
        $region35: #{tpu_custom_call.1} parent=31 // pred_region
          %219 = dma.done %s212, 256
        $region36: #{tpu_custom_call.1} parent=31 // pred_fallthru
          _
        %s220 = sand.u32 %s23, 1
        %s221 = scalar_lea.sflag [#allocation6], %s220
        %s222 = sand.u32 %s57, 1
        %s223 = smul.addr %s222, 16
        %s224 = scalar_lea.vmem [#allocation5], %s223
        // Predicated region
        $region37: #{tpu_custom_call.1} parent=31 // pred_check
          %p225 = pneg %p70
        $region38: #{tpu_custom_call.1} parent=31 // pred_check_branch
          %227 = sbr.rel (%p225) target = $region40
        $region39: #{tpu_custom_call.1} parent=31 // pred_region
          %228 = dma.done %s221, 256
        $region40: #{tpu_custom_call.1} parent=31 // pred_fallthru
          _
        %s229 = sand.u32 %s23, 1
        %s230 = scalar_lea.sflag [#allocation6], %s229
        %s231 = sand.u32 %s83, 1
        %s232 = smul.addr %s231, 16
        %s233 = scalar_lea.vmem [#allocation7], %s232
        // Predicated region
        $region41: #{tpu_custom_call.1} parent=31 // pred_check
          %p234 = pneg %p96
        $region42: #{tpu_custom_call.1} parent=31 // pred_check_branch
          %236 = sbr.rel (%p234) target = $region44
        $region43: #{tpu_custom_call.1} parent=31 // pred_region
          %237 = dma.done %s230, 256
        $region44: #{tpu_custom_call.1} parent=31 // pred_fallthru
          _
        %s238 = sand.u32 %s31, 1
        %s239 = scalar_lea.sflag [#allocation3], %s238
        %s240 = sand.u32 %s31, 1
        %s241 = smul.addr %s240, 16
        %s242 = scalar_lea.vmem [#allocation2], %s241
        %p243 = pneg %p44
        %p244 = pneg %p41
        %s245 = sand.u32 %s23, 1
        %s246 = scalar_lea.sflag [#allocation6], %s245
        %s247 = sand.u32 %s57, 1
        %s248 = smul.addr %s247, 16
        %s249 = scalar_lea.vmem [#allocation5], %s248
        %p250 = pneg %p70
        %p251 = pneg %p67
        %s252 = sand.u32 %s23, 1
        %s253 = scalar_lea.sflag [#allocation6], %s252
        %s254 = sand.u32 %s83, 1
        %s255 = smul.addr %s254, 16
        %s256 = scalar_lea.vmem [#allocation7], %s255
        %p257 = pneg %p96
        %p258 = pneg %p93
        %p259 = pneg %p122
        %p260 = pneg %p119
        %s261 = sand.u32 %s109, 1
        %s262 = scalar_lea.sflag [#allocation4], %s261
        %s263 = sand.u32 %s109, 1
        %s264 = smul.addr %s263, 16
        %s265 = scalar_lea.vmem [#allocation8], %s264
        %s266 = smul.u32 2, %s23
        %s267 = smul.u32 2, %s23
        %s268 = smul.u32 2, %s23
        %s269 = smul.u32 2, %s23
        %v270 = vld [vmem:[%s215] sm:$0xff]
        %v271 = vld [vmem:[%s215 + $0x8] sm:$0xff]
        %v272 = vld [vmem:[%s224] sm:$0xff]
        %v273 = vld [vmem:[%s224 + $0x8] sm:$0xff]
        %v274 = vld [vmem:[%s233] sm:$0xff]
        %v275 = vld [vmem:[%s233 + $0x8] sm:$0xff]
        %276 = vmatprep.subr.mxu0 0.0
        %277 = vmatpush1.xpose.msra.mxu0 %v272
        %278 = vmatprep.subr.mxu0 0.0
        %279 = vmatpush1.xpose.msra.mxu0 0.0
        %280 = vmatprep.subr.mxu0 0.0
        %281 = vmatpush1.xpose.msra.mxu0 0.0
        %282 = vmatprep.subr.mxu0 0.0
        %283 = vmatpush1.xpose.msra.mxu0 0.0
        %284 = vmatprep.subr.mxu0 0.0
        %285 = vmatpush1.xpose.msra.mxu0 0.0
        %286 = vmatprep.subr.mxu0 0.0
        %287 = vmatpush1.xpose.msra.mxu0 0.0
        %288 = vmatprep.subr.mxu0 0.0
        %289 = vmatpush1.xpose.msra.mxu0 0.0
        %290 = vmatprep.subr.mxu0 0.0
        %291 = vmatpush1.xpose.msra.mxu0 0.0
        %292 = vmatprep.subr.mxu0 0.0
        %293 = vmatpush1.xpose.msra.mxu0 0.0
        %294 = vmatprep.subr.mxu0 0.0
        %295 = vmatpush1.xpose.msra.mxu0 0.0
        %296 = vmatprep.subr.mxu0 0.0
        %297 = vmatpush1.xpose.msra.mxu0 0.0
        %298 = vmatprep.subr.mxu0 0.0
        %299 = vmatpush1.xpose.msra.mxu0 0.0
        %300 = vmatprep.subr.mxu0 0.0
        %301 = vmatpush1.xpose.msra.mxu0 0.0
        %302 = vmatprep.subr.mxu0 0.0
        %303 = vmatpush1.xpose.msra.mxu0 0.0
        %304 = vmatprep.subr.mxu0 0.0
        %305 = vmatpush1.xpose.msra.mxu0 0.0
        %306 = vmatprep.subr.mxu0 0.0
        %307 = vmatpush1.xpose.msra.mxu0 0.0
        %308 = vmatprep.subr.mxu0 0.0
        %309 = vmatpush1.xpose.msra.mxu0 0.0
        %310 = vmatprep.subr.mxu0 0.0
        %311 = vmatpush1.xpose.msra.mxu0 0.0
        %312 = vmatprep.subr.mxu0 0.0
        %313 = vmatpush1.xpose.msra.mxu0 0.0
        %314 = vmatprep.subr.mxu0 0.0
        %315 = vmatpush1.xpose.msra.mxu0 0.0
        %316 = vmatprep.subr.mxu0 0.0
        %317 = vmatpush1.xpose.msra.mxu0 0.0
        %318 = vmatprep.subr.mxu0 0.0
        %319 = vmatpush1.xpose.msra.mxu0 0.0
        %320 = vmatprep.subr.mxu0 0.0
        %321 = vmatpush1.xpose.msra.mxu0 0.0
        %322 = vmatprep.subr.mxu0 0.0
        %323 = vmatpush1.xpose.msra.mxu0 0.0
        %324 = vmatprep.subr.mxu0 0.0
        %325 = vmatpush1.xpose.msra.mxu0 0.0
        %326 = vmatprep.subr.mxu0 0.0
        %327 = vmatpush1.xpose.msra.mxu0 0.0
        %328 = vmatprep.subr.mxu0 0.0
        %329 = vmatpush1.xpose.msra.mxu0 0.0
        %330 = vmatprep.subr.mxu0 0.0
        %331 = vmatpush1.xpose.msra.mxu0 0.0
        %332 = vmatprep.subr.mxu0 0.0
        %333 = vmatpush1.xpose.msra.mxu0 0.0
        %334 = vmatprep.subr.mxu0 0.0
        %335 = vmatpush1.xpose.msra.mxu0 0.0
        %336 = vmatprep.subr.mxu0 0.0
        %337 = vmatpush1.xpose.msra.mxu0 0.0
        %338 = vmatprep.subr.mxu0 0.0
        %339 = vmatpush1.xpose.msra.mxu0 0.0
        %340 = vmatprep.mubr.f32.mxu0 0.0
        %341 = vmatmul.mubr.f32.gmra.mrb[0].mxu0 %v270
        %v342 = vpop.f32.mrb[0].mxu0
        %v343 = vadd.f32 0.0, %v342
        %v344 = vpop.f32.mrb[0].mxu0
        %345 = vdwg.mxu0
        %346 = vmatprep.subr.mxu0 0.0
        %347 = vmatpush1.xpose.msra.mxu0 %v273
        %348 = vmatprep.subr.mxu0 0.0
        %349 = vmatpush1.xpose.msra.mxu0 0.0
        %350 = vmatprep.subr.mxu0 0.0
        %351 = vmatpush1.xpose.msra.mxu0 0.0
        %352 = vmatprep.subr.mxu0 0.0
        %353 = vmatpush1.xpose.msra.mxu0 0.0
        %354 = vmatprep.subr.mxu0 0.0
        %355 = vmatpush1.xpose.msra.mxu0 0.0
        %356 = vmatprep.subr.mxu0 0.0
        %357 = vmatpush1.xpose.msra.mxu0 0.0
        %358 = vmatprep.subr.mxu0 0.0
        %359 = vmatpush1.xpose.msra.mxu0 0.0
        %360 = vmatprep.subr.mxu0 0.0
        %361 = vmatpush1.xpose.msra.mxu0 0.0
        %362 = vmatprep.subr.mxu0 0.0
        %363 = vmatpush1.xpose.msra.mxu0 0.0
        %364 = vmatprep.subr.mxu0 0.0
        %365 = vmatpush1.xpose.msra.mxu0 0.0
        %366 = vmatprep.subr.mxu0 0.0
        %367 = vmatpush1.xpose.msra.mxu0 0.0
        %368 = vmatprep.subr.mxu0 0.0
        %369 = vmatpush1.xpose.msra.mxu0 0.0
        %370 = vmatprep.subr.mxu0 0.0
        %371 = vmatpush1.xpose.msra.mxu0 0.0
        %372 = vmatprep.subr.mxu0 0.0
        %373 = vmatpush1.xpose.msra.mxu0 0.0
        %374 = vmatprep.subr.mxu0 0.0
        %375 = vmatpush1.xpose.msra.mxu0 0.0
        %376 = vmatprep.subr.mxu0 0.0
        %377 = vmatpush1.xpose.msra.mxu0 0.0
        %378 = vmatprep.subr.mxu0 0.0
        %379 = vmatpush1.xpose.msra.mxu0 0.0
        %380 = vmatprep.subr.mxu0 0.0
        %381 = vmatpush1.xpose.msra.mxu0 0.0
        %382 = vmatprep.subr.mxu0 0.0
        %383 = vmatpush1.xpose.msra.mxu0 0.0
        %384 = vmatprep.subr.mxu0 0.0
        %385 = vmatpush1.xpose.msra.mxu0 0.0
        %386 = vmatprep.subr.mxu0 0.0
        %387 = vmatpush1.xpose.msra.mxu0 0.0
        %388 = vmatprep.subr.mxu0 0.0
        %389 = vmatpush1.xpose.msra.mxu0 0.0
        %390 = vmatprep.subr.mxu0 0.0
        %391 = vmatpush1.xpose.msra.mxu0 0.0
        %392 = vmatprep.subr.mxu0 0.0
        %393 = vmatpush1.xpose.msra.mxu0 0.0
        %394 = vmatprep.subr.mxu0 0.0
        %395 = vmatpush1.xpose.msra.mxu0 0.0
        %396 = vmatprep.subr.mxu0 0.0
        %397 = vmatpush1.xpose.msra.mxu0 0.0
        %398 = vmatprep.subr.mxu0 0.0
        %399 = vmatpush1.xpose.msra.mxu0 0.0
        %400 = vmatprep.subr.mxu0 0.0
        %401 = vmatpush1.xpose.msra.mxu0 0.0
        %402 = vmatprep.subr.mxu0 0.0
        %403 = vmatpush1.xpose.msra.mxu0 0.0
        %404 = vmatprep.subr.mxu0 0.0
        %405 = vmatpush1.xpose.msra.mxu0 0.0
        %406 = vmatprep.subr.mxu0 0.0
        %407 = vmatpush1.xpose.msra.mxu0 0.0
        %408 = vmatprep.subr.mxu0 0.0
        %409 = vmatpush1.xpose.msra.mxu0 0.0
        %410 = vmatprep.mubr.f32.mxu0 0.0
        %411 = vmatmul.mubr.f32.gmra.mrb[0].mxu0 %v271
        %v412 = vpop.f32.mrb[0].mxu0
        %v413 = vadd.f32 0.0, %v412
        %v414 = vpop.f32.mrb[0].mxu0
        %415 = vdwg.mxu0
        %vm416 = vcmask 64512
        %v417 = vsel %vm416, %v343, -inf
        %418 = vmax.xlane.f32.xlu0 %v417
        %v419 = vpop.xlane.xlu0 %418
        %v420 = vsel %vm416, %v413, -inf
        %421 = vmax.xlane.f32.xlu0 %v420
        %v422 = vpop.xlane.xlu0 %421
        %v423 = vsub.f32 %v343, %v419
        %v424 = vsub.f32 %v413, %v422
        %v425 = vmul.f32 %v423, 1.442695
        %v426 = vpow.pop %v425
        %v427 = vmul.f32 %v424, 1.442695
        %v428 = vpow.pop %v427
        %v429 = vsel %vm416, %v426, 0.0
        %430 = vadd.xlane.f32.xlu0 %v429
        %v431 = vpop.xlane.xlu0 %430
        %v432 = vsel %vm416, %v428, 0.0
        %433 = vadd.xlane.f32.xlu0 %v432
        %v434 = vpop.xlane.xlu0 %433
        %v436 = vsel %vm416, %v426, 0
        %438 = vmatprep.subr.mxu0 0.0
        %439 = vmatpush1.msra.mxu0 %v274
        %440 = vmatprep.subr.mxu0 0.0
        %441 = vmatpush1.msra.mxu0 0.0
        %442 = vmatprep.subr.mxu0 0.0
        %443 = vmatpush1.msra.mxu0 0.0
        %444 = vmatprep.subr.mxu0 0.0
        %445 = vmatpush1.msra.mxu0 0.0
        %446 = vmatprep.subr.mxu0 0.0
        %447 = vmatpush1.msra.mxu0 0.0
        %448 = vmatprep.subr.mxu0 0.0
        %449 = vmatpush1.msra.mxu0 0.0
        %450 = vmatprep.subr.mxu0 0.0
        %451 = vmatpush1.msra.mxu0 0.0
        %452 = vmatprep.subr.mxu0 0.0
        %453 = vmatpush1.msra.mxu0 0.0
        %454 = vmatprep.subr.mxu0 0.0
        %455 = vmatpush1.msra.mxu0 0.0
        %456 = vmatprep.subr.mxu0 0.0
        %457 = vmatpush1.msra.mxu0 0.0
        %458 = vmatprep.subr.mxu0 0.0
        %459 = vmatpush1.msra.mxu0 0.0
        %460 = vmatprep.subr.mxu0 0.0
        %461 = vmatpush1.msra.mxu0 0.0
        %462 = vmatprep.subr.mxu0 0.0
        %463 = vmatpush1.msra.mxu0 0.0
        %464 = vmatprep.subr.mxu0 0.0
        %465 = vmatpush1.msra.mxu0 0.0
        %466 = vmatprep.subr.mxu0 0.0
        %467 = vmatpush1.msra.mxu0 0.0
        %468 = vmatprep.subr.mxu0 0.0
        %469 = vmatpush1.msra.mxu0 0.0
        %470 = vmatprep.subr.mxu0 0.0
        %471 = vmatpush1.msra.mxu0 0.0
        %472 = vmatprep.subr.mxu0 0.0
        %473 = vmatpush1.msra.mxu0 0.0
        %474 = vmatprep.subr.mxu0 0.0
        %475 = vmatpush1.msra.mxu0 0.0
        %476 = vmatprep.subr.mxu0 0.0
        %477 = vmatpush1.msra.mxu0 0.0
        %478 = vmatprep.subr.mxu0 0.0
        %479 = vmatpush1.msra.mxu0 0.0
        %480 = vmatprep.subr.mxu0 0.0
        %481 = vmatpush1.msra.mxu0 0.0
        %482 = vmatprep.subr.mxu0 0.0
        %483 = vmatpush1.msra.mxu0 0.0
        %484 = vmatprep.subr.mxu0 0.0
        %485 = vmatpush1.msra.mxu0 0.0
        %486 = vmatprep.subr.mxu0 0.0
        %487 = vmatpush1.msra.mxu0 0.0
        %488 = vmatprep.subr.mxu0 0.0
        %489 = vmatpush1.msra.mxu0 0.0
        %490 = vmatprep.subr.mxu0 0.0
        %491 = vmatpush1.msra.mxu0 0.0
        %492 = vmatprep.subr.mxu0 0.0
        %493 = vmatpush1.msra.mxu0 0.0
        %494 = vmatprep.subr.mxu0 0.0
        %495 = vmatpush1.msra.mxu0 0.0
        %496 = vmatprep.subr.mxu0 0.0
        %497 = vmatpush1.msra.mxu0 0.0
        %498 = vmatprep.subr.mxu0 0.0
        %499 = vmatpush1.msra.mxu0 0.0
        %500 = vmatprep.subr.mxu0 0.0
        %501 = vmatpush1.msra.mxu0 0.0
        %502 = vmatprep.mubr.f32.mxu0 0.0
        %503 = vmatmul.mubr.f32.gmra.mrb[0].mxu0 %v436
        %v504 = vpop.f32.mrb[0].mxu0
        %v505 = vadd.f32 0.0, %v504
        %v506 = vpop.f32.mrb[0].mxu0
        %507 = vdwg.mxu0
        %v509 = vsel %vm416, %v428, 0
        %511 = vmatprep.subr.mxu0 0.0
        %512 = vmatpush1.msra.mxu0 %v275
        %513 = vmatprep.subr.mxu0 0.0
        %514 = vmatpush1.msra.mxu0 0.0
        %515 = vmatprep.subr.mxu0 0.0
        %516 = vmatpush1.msra.mxu0 0.0
        %517 = vmatprep.subr.mxu0 0.0
        %518 = vmatpush1.msra.mxu0 0.0
        %519 = vmatprep.subr.mxu0 0.0
        %520 = vmatpush1.msra.mxu0 0.0
        %521 = vmatprep.subr.mxu0 0.0
        %522 = vmatpush1.msra.mxu0 0.0
        %523 = vmatprep.subr.mxu0 0.0
        %524 = vmatpush1.msra.mxu0 0.0
        %525 = vmatprep.subr.mxu0 0.0
        %526 = vmatpush1.msra.mxu0 0.0
        %527 = vmatprep.subr.mxu0 0.0
        %528 = vmatpush1.msra.mxu0 0.0
        %529 = vmatprep.subr.mxu0 0.0
        %530 = vmatpush1.msra.mxu0 0.0
        %531 = vmatprep.subr.mxu0 0.0
        %532 = vmatpush1.msra.mxu0 0.0
        %533 = vmatprep.subr.mxu0 0.0
        %534 = vmatpush1.msra.mxu0 0.0
        %535 = vmatprep.subr.mxu0 0.0
        %536 = vmatpush1.msra.mxu0 0.0
        %537 = vmatprep.subr.mxu0 0.0
        %538 = vmatpush1.msra.mxu0 0.0
        %539 = vmatprep.subr.mxu0 0.0
        %540 = vmatpush1.msra.mxu0 0.0
        %541 = vmatprep.subr.mxu0 0.0
        %542 = vmatpush1.msra.mxu0 0.0
        %543 = vmatprep.subr.mxu0 0.0
        %544 = vmatpush1.msra.mxu0 0.0
        %545 = vmatprep.subr.mxu0 0.0
        %546 = vmatpush1.msra.mxu0 0.0
        %547 = vmatprep.subr.mxu0 0.0
        %548 = vmatpush1.msra.mxu0 0.0
        %549 = vmatprep.subr.mxu0 0.0
        %550 = vmatpush1.msra.mxu0 0.0
        %551 = vmatprep.subr.mxu0 0.0
        %552 = vmatpush1.msra.mxu0 0.0
        %553 = vmatprep.subr.mxu0 0.0
        %554 = vmatpush1.msra.mxu0 0.0
        %555 = vmatprep.subr.mxu0 0.0
        %556 = vmatpush1.msra.mxu0 0.0
        %557 = vmatprep.subr.mxu0 0.0
        %558 = vmatpush1.msra.mxu0 0.0
        %559 = vmatprep.subr.mxu0 0.0
        %560 = vmatpush1.msra.mxu0 0.0
        %561 = vmatprep.subr.mxu0 0.0
        %562 = vmatpush1.msra.mxu0 0.0
        %563 = vmatprep.subr.mxu0 0.0
        %564 = vmatpush1.msra.mxu0 0.0
        %565 = vmatprep.subr.mxu0 0.0
        %566 = vmatpush1.msra.mxu0 0.0
        %567 = vmatprep.subr.mxu0 0.0
        %568 = vmatpush1.msra.mxu0 0.0
        %569 = vmatprep.subr.mxu0 0.0
        %570 = vmatpush1.msra.mxu0 0.0
        %571 = vmatprep.subr.mxu0 0.0
        %572 = vmatpush1.msra.mxu0 0.0
        %573 = vmatprep.subr.mxu0 0.0
        %574 = vmatpush1.msra.mxu0 0.0
        %575 = vmatprep.mubr.f32.mxu0 0.0
        %576 = vmatmul.mubr.f32.gmra.mrb[0].mxu0 %v509
        %v577 = vpop.f32.mrb[0].mxu0
        %v578 = vadd.f32 0.0, %v577
        %v579 = vpop.f32.mrb[0].mxu0
        %580 = vdwg.mxu0
        %v581 = vrcp.pop %v431
        %v582 = vrcp.pop %v434
        %v583 = vmul.f32 %v505, %v581
        %v584 = vmul.f32 %v578, %v582
        %585 = vst [vmem:[%s265] sm:$0xff] %v583
        %586 = vst [vmem:[%s265 + $0x8] sm:$0xff] %v584
        %s587 = sand.u32 %s109, 1
        %s588 = scalar_lea.sflag [#allocation4], %s587
        %s589 = sand.u32 %s109, 1
        %s590 = smul.addr %s589, 16
        %s591 = scalar_lea.vmem [#allocation8], %s590
        // Predicated region
        $region45: #{tpu_custom_call.1} parent=31 // pred_check
          %p592 = pneg %p119
        $region46: #{tpu_custom_call.1} parent=31 // pred_check_branch
          %594 = sbr.rel (%p592) target = $region48
        $region47: #{tpu_custom_call.1} parent=31 // pred_region
          %s595 = smul.u32 2, %s23
          %s597 = ssub.s32 256, 256
          %598 = vsyncadd %s588, %s597
          %s599 = smul.addr %s595, 128
          %s600 = scalar_lea.hbm %s3, %s599
          %s601 = sshll.u32 %s591, 4
          %s602 = int_to_ptr.vmem [resolvable:$true] %s601
          %607 = dma.vmem_to_hbm [thread:$0]  %s602, 256, %s600, %s588, 128, 128, 8
        $region48: #{tpu_custom_call.1} parent=31 // pred_fallthru
          _
      $region32: #{tpu_custom_call.1} parent=5 // pred_fallthru
        _
      %p608 = scmp.le.s32.totalorder 2, %s18
      // Predicated region
      $region49: #{tpu_custom_call.1} parent=5 // pred_check
        %p609 = pneg %p608
      $region50: #{tpu_custom_call.1} parent=5 // pred_check_branch
        %611 = sbr.rel (%p609) target = $region52
      $region51: #{tpu_custom_call.1} parent=5 // pred_region
        %s612 = ssub.s32 %s18, 2
        // Predicated region
        $region53: #{tpu_custom_call.1} parent=51 // pred_check
          %p613 = pneg %p125
        $region54: #{tpu_custom_call.1} parent=51 // pred_check_branch
          %615 = sbr.rel (%p613) target = $region56
        $region55: #{tpu_custom_call.1} parent=51 // pred_region
          %s616 = sand.u32 %s110, 1
          %s617 = scalar_lea.sflag [#allocation4], %s616
          %s618 = sand.u32 %s110, 1
          %s619 = smul.addr %s618, 16
          %s620 = scalar_lea.vmem [#allocation8], %s619
          %621 = dma.done %s617, 256
        $region56: #{tpu_custom_call.1} parent=51 // pred_fallthru
          _
      $region52: #{tpu_custom_call.1} parent=5 // pred_fallthru
        _
    $region6: #{tpu_custom_call.1} parent=1 // loop_footer
      %s22 = sadd.s32 1, %s18
    $region7: #{tpu_custom_call.1} parent=1 // loop_footer_branch
      %17 = sbr.rel target = $region3
    $region8: #{tpu_custom_call.1} parent=1 // loop_exit
      _
    %622 = vsyncpa [#allocation3], 1
    %s623 = scalar_lea.sflag [#allocation3], 1
    %624 = vsyncpa %s623, 1
    %625 = vsyncpa [#allocation6], 1
    %s626 = scalar_lea.sflag [#allocation6], 1
    %627 = vsyncpa %s626, 1
    %628 = vsyncpa [#allocation4], 1
    %s629 = scalar_lea.sflag [#allocation4], 1
    %630 = vsyncpa %s629, 1

</llo_original>
